<compile_context>
chip_gen: v5e
topology: v5e:2x2
jax: 0.10.0
libtpu: 0.0.40
codegen_flags: <defaults>
</compile_context>

<pallas_src>
import functools

import jax
import jax.numpy as jnp
from jax.experimental import pallas as pl
from jax.experimental.pallas import tpu as pltpu  # noqa: F401  (TPU backend)

# --- model config (ConvNetBackEnd(in_channels=4, norm_method='gn', norm_position='both')) ---
IN_CHANNELS = 4
OUT_CHANNELS = 20
KSIZE = 5
NUM_GROUPS = 4
GN_EPS = 1e-5
FC_IN = 500
FC_OUT = 10


def _fused_kernel(patches_ref, wc_ref, bc_ref, gamma_ref, beta_ref,
                  s_ref, st_ref, gbig_ref, gtbig_ref, rep_ref, wexp_ref,
                  csum_ref, fcb_ref, out_ref, *, bm_pad, n_per_group, eps):
    """conv(im2col) + GroupNorm + ReLU + 2x2 maxpool + Linear, fully fused.

    patches_ref: (4*BMp, K)  rows = pool-pos * BMp + (b*25 + ph*5 + pw), pad rows zero
    wc_ref:      (K, C)      conv weight (im2col layout)
    bc/gamma/beta: (1, C)
    s_ref:  (BMp, B)  one-hot row->batch (zero rows for padding)
    st_ref: (B, BMp)  transpose
    gbig_ref:  (2C, 2NG) block-diag [G 0; 0 G]   gtbig_ref: (2NG, 2C) block-diag [G^T 0; 0 G^T]
    rep_ref:   (C, C*10)  channel -> lane-group replication
    wexp_ref:  (BMp, C*10) per-row expanded FC weight: [r, c*10+o] = W_fc[o, c*25 + m(r)]
    csum_ref:  (C*10, 10)  fold channel groups back to the 10 outputs
    fcb_ref:   (1, 10)
    out_ref:   (B, 10)
    """
    C = OUT_CHANNELS
    NG = NUM_GROUPS

    # --- conv for all 4 pool-window positions in ONE MXU matmul ---
    conv_all = (jnp.dot(patches_ref[...], wc_ref[...],
                        preferred_element_type=jnp.float32) + bc_ref[...])    # (4*BMp, C)

    # --- single-pass GroupNorm statistics, lane-concatenated [x | x^2] ---
    cat = jnp.concatenate([conv_all, conv_all * conv_all], axis=-1)           # (4*BMp, 2C)
    sum_cat = (cat[0 * bm_pad:1 * bm_pad] + cat[1 * bm_pad:2 * bm_pad] +
               cat[2 * bm_pad:3 * bm_pad] + cat[3 * bm_pad:4 * bm_pad])       # (BMp, 2C)
    pb = jnp.dot(st_ref[...], sum_cat, preferred_element_type=jnp.float32)    # (B, 2C)
    grp = jnp.dot(pb, gbig_ref[...], preferred_element_type=jnp.float32)      # (B, 2NG)
    inv_n = 1.0 / n_per_group
    mean_g = grp[:, :NG] * inv_n                                              # (B, NG)
    ex2_g = grp[:, NG:] * inv_n
    rstd_g = jax.lax.rsqrt(ex2_g - mean_g * mean_g + eps)                     # (B, NG)
    per_c = jnp.dot(jnp.concatenate([mean_g, rstd_g], axis=-1), gtbig_ref[...],
                    preferred_element_type=jnp.float32)                       # (B, 2C)
    scale_c = per_c[:, C:] * gamma_ref[...]                                   # rstd * gamma
    shift_c = beta_ref[...] - per_c[:, :C] * scale_c                          # beta - mean*scale
    ss = jnp.dot(s_ref[...], jnp.concatenate([scale_c, shift_c], axis=-1),
                 preferred_element_type=jnp.float32)                          # (BMp, 2C)
    scale_bm = ss[:, :C]
    shift_bm = ss[:, C:]

    # --- normalize + affine, running 2x2 max-pool, single ReLU ---
    acc = conv_all[0:bm_pad] * scale_bm + shift_bm
    for i in range(1, 4):
        acc = jnp.maximum(acc,
                          conv_all[i * bm_pad:(i + 1) * bm_pad] * scale_bm + shift_bm)
    pooled = jnp.maximum(acc, 0.0)                                            # (BMp, C)

    # --- fused FC: replicate channels across lane groups, multiply by per-row weight,
    #     fold back to 10 outputs, then the same one-hot batch reduction ---
    rep = jnp.dot(pooled, rep_ref[...], preferred_element_type=jnp.float32)   # (BMp, C*10)
    t = jnp.dot(rep * wexp_ref[...], csum_ref[...],
                preferred_element_type=jnp.float32)                           # (BMp, 10)
    out_ref[...] = (jnp.dot(st_ref[...], t, preferred_element_type=jnp.float32)
                    + fcb_ref[...])


def convnet_backend_forward(x, conv_w, conv_b, gamma, beta, fc_w, fc_b):
    B, Cin, H, W = x.shape
    Ho, Wo = H - KSIZE + 1, W - KSIZE + 1        # 10, 10
    Hp, Wp = Ho // 2, Wo // 2                    # 5, 5
    K = Cin * KSIZE * KSIZE                      # 100
    M = Hp * Wp                                  # 25 pooled locations per image
    BM = B * M
    BM_pad = ((BM + 7) // 8) * 8                 # sublane-aligned row count (56)
    C = OUT_CHANNELS

    # ---- glue: im2col with pool-window-major ordering, padded to BM_pad rows ----
    cols = [x[:, :, kh:kh + Ho, kw:kw + Wo] for kh in range(KSIZE) for kw in range(KSIZE)]
    patches = jnp.stack(cols, axis=2).reshape(B, K, Ho, Wo)     # k = c*25 + kh*5 + kw
    patches = patches.reshape(B, K, Hp, 2, Wp, 2)               # (B, K, ph, dy, pw, dx)
    patches = patches.transpose(3, 5, 0, 2, 4, 1).reshape(4, BM, K)
    patches = jnp.pad(patches, ((0, 0), (0, BM_pad - BM), (0, 0)))
    patches = patches.reshape(4 * BM_pad, K).astype(jnp.float32)

    wc = conv_w.reshape(C, K).T.astype(jnp.float32)             # (K, C) im2col weight
    bc = conv_b.reshape(1, C).astype(jnp.float32)
    gamma2 = gamma.reshape(1, C).astype(jnp.float32)
    beta2 = beta.reshape(1, C).astype(jnp.float32)

    # one-hot scatter/gather matrices (pad rows -> zero columns, so stats/FC ignore them)
    row_local = jnp.arange(BM_pad)
    row_batch = jnp.where(row_local < BM, row_local // M, B)    # index B => all-zero one-hot
    S = jax.nn.one_hot(row_batch, B, dtype=jnp.float32)         # (BM_pad, B)
    ST = S.T                                                    # (B, BM_pad)

    G = jax.nn.one_hot(jnp.arange(C) // (C // NUM_GROUPS), NUM_GROUPS,
                       dtype=jnp.float32)                       # (C, NG)
    eye2 = jnp.eye(2, dtype=jnp.float32)
    Gbig = jnp.kron(eye2, G)                                    # (2C, 2NG) block-diag
    GTbig = jnp.kron(eye2, G.T)                                 # (2NG, 2C) block-diag

    # FC helpers: Rep replicates channel c into lanes c*10..c*10+9, Csum folds them back.
    Rep = jnp.repeat(jnp.eye(C, dtype=jnp.float32), FC_OUT, axis=1)     # (C, C*10)
    Csum = jnp.tile(jnp.eye(FC_OUT, dtype=jnp.float32), (C, 1))         # (C*10, 10)

    # per-row expanded FC weight: wexp[r, c*10+o] = fc_w[o, c*25 + m(r)], zero on pad rows
    w_mco = fc_w.reshape(FC_OUT, C, M).transpose(2, 1, 0).reshape(M, C * FC_OUT)
    wexp = jnp.tile(w_mco, (B, 1))
    wexp = jnp.pad(wexp, ((0, BM_pad - BM), (0, 0))).astype(jnp.float32)  # (BM_pad, C*10)
    fcb = fc_b.reshape(1, FC_OUT).astype(jnp.float32)

    n_per_group = float((C // NUM_GROUPS) * 4 * M)              # 5 * 100 = 500

    kernel = functools.partial(_fused_kernel, bm_pad=BM_pad,
                               n_per_group=n_per_group, eps=GN_EPS)
    out = pl.pallas_call(
        kernel,
        out_shape=jax.ShapeDtypeStruct((B, FC_OUT), jnp.float32),
        grid=(1,),
        in_specs=[
            pl.BlockSpec((4 * BM_pad, K), lambda i: (0, 0)),
            pl.BlockSpec((K, C), lambda i: (0, 0)),
            pl.BlockSpec((1, C), lambda i: (0, 0)),
            pl.BlockSpec((1, C), lambda i: (0, 0)),
            pl.BlockSpec((1, C), lambda i: (0, 0)),
            pl.BlockSpec((BM_pad, B), lambda i: (0, 0)),
            pl.BlockSpec((B, BM_pad), lambda i: (0, 0)),
            pl.BlockSpec((2 * C, 2 * NUM_GROUPS), lambda i: (0, 0)),
            pl.BlockSpec((2 * NUM_GROUPS, 2 * C), lambda i: (0, 0)),
            pl.BlockSpec((C, C * FC_OUT), lambda i: (0, 0)),
            pl.BlockSpec((BM_pad, C * FC_OUT), lambda i: (0, 0)),
            pl.BlockSpec((C * FC_OUT, FC_OUT), lambda i: (0, 0)),
            pl.BlockSpec((1, FC_OUT), lambda i: (0, 0)),
        ],
        out_specs=pl.BlockSpec((B, FC_OUT), lambda i: (0, 0)),
    )(patches, wc, bc, gamma2, beta2, S, ST, Gbig, GTbig, Rep, wexp, Csum, fcb)
    return out


def reference_forward(x, conv_w, conv_b, gamma, beta, fc_w, fc_b):
    """Pure-JAX mirror of the PyTorch forward (NCHW)."""
    y = jax.lax.conv_general_dilated(
        x, conv_w, window_strides=(1, 1), padding='VALID',
        dimension_numbers=('NCHW', 'OIHW', 'NCHW'),
        precision=jax.lax.Precision.HIGHEST) + conv_b[None, :, None, None]
    B, C, H, W = y.shape
    yg = y.reshape(B, NUM_GROUPS, C // NUM_GROUPS, H, W)
    mean = yg.mean(axis=(2, 3, 4), keepdims=True)
    var = ((yg - mean) ** 2).mean(axis=(2, 3, 4), keepdims=True)
    yn = (yg - mean) / jnp.sqrt(var + GN_EPS)
    yn = yn.reshape(B, C, H, W) * gamma[None, :, None, None] + beta[None, :, None, None]
    yr = jnp.maximum(yn, 0.0)
    yp = yr.reshape(B, C, H // 2, 2, W // 2, 2).max(axis=(3, 5))
    flat = yp.reshape(B, -1)
    return jnp.dot(flat, fc_w.T, precision=jax.lax.Precision.HIGHEST) + fc_b[None, :]


if __name__ == "__main__":
    key = jax.random.PRNGKey(0)
    k1, k2, k3, k4, k5, k6 = jax.random.split(key, 6)

    B, H, W = 2, 14, 14            # 14x14 -> conv 10x10 -> pool 5x5 -> 500 = fc in_features
    x = jax.random.normal(k1, (B, IN_CHANNELS, H, W), jnp.float32)

    # deterministic synthetic parameters (shapes from the module's __init__)
    conv_w = 0.1 * jax.random.normal(k2, (OUT_CHANNELS, IN_CHANNELS, KSIZE, KSIZE), jnp.float32)
    conv_b = 0.1 * jax.random.normal(k3, (OUT_CHANNELS,), jnp.float32)
    gamma = 1.0 + 0.1 * jax.random.normal(k4, (OUT_CHANNELS,), jnp.float32)   # GroupNorm affine
    beta = 0.1 * jax.random.normal(k5, (OUT_CHANNELS,), jnp.float32)
    fc_w = 0.05 * jax.random.normal(k6, (FC_OUT, FC_IN), jnp.float32)
    fc_b = jnp.linspace(-0.1, 0.1, FC_OUT, dtype=jnp.float32)

    out = convnet_backend_forward(x, conv_w, conv_b, gamma, beta, fc_w, fc_b)
    out = jax.block_until_ready(out)
    assert out.shape == (B, FC_OUT)

    ref = reference_forward(x, conv_w, conv_b, gamma, beta, fc_w, fc_b)
    if not jnp.allclose(out, ref, atol=2e-3, rtol=2e-3):
        raise AssertionError("Pallas output does not match JAX reference")

    print("KERNEL_OK")
</pallas_src>

<mosaic_0001>
module attributes {stable_mosaic.version = 11 : i64} {
  func.func @_fused_kernel(%arg0: i32, %arg1: memref<224x100xf32, #tpu.memory_space<vmem>>, %arg2: memref<100x20xf32, #tpu.memory_space<vmem>>, %arg3: memref<1x20xf32, #tpu.memory_space<vmem>>, %arg4: memref<1x20xf32, #tpu.memory_space<vmem>>, %arg5: memref<1x20xf32, #tpu.memory_space<vmem>>, %arg6: memref<56x2xf32, #tpu.memory_space<vmem>>, %arg7: memref<2x56xf32, #tpu.memory_space<vmem>>, %arg8: memref<40x8xf32, #tpu.memory_space<vmem>>, %arg9: memref<8x40xf32, #tpu.memory_space<vmem>>, %arg10: memref<20x200xf32, #tpu.memory_space<vmem>>, %arg11: memref<56x200xf32, #tpu.memory_space<vmem>>, %arg12: memref<200x10xf32, #tpu.memory_space<vmem>>, %arg13: memref<1x10xf32, #tpu.memory_space<vmem>>, %arg14: memref<2x10xf32, #tpu.memory_space<vmem>>) attributes {dimension_semantics = [#tpu.dimension_semantics<arbitrary>], iteration_bounds = array<i64: 1>, scalar_prefetch = 0 : i64, scratch_operands = 0 : i64, tpu.core_type = #tpu.core_type<tc>, window_params = [{pipeline_mode = #tpu.pipeline_mode<synchronous>, transform_indices = @transform_0, window_bounds = array<i64: 224, 100>}, {pipeline_mode = #tpu.pipeline_mode<synchronous>, transform_indices = @transform_1, window_bounds = array<i64: 100, 20>}, {pipeline_mode = #tpu.pipeline_mode<synchronous>, transform_indices = @transform_2, window_bounds = array<i64: 1, 20>}, {pipeline_mode = #tpu.pipeline_mode<synchronous>, transform_indices = @transform_3, window_bounds = array<i64: 1, 20>}, {pipeline_mode = #tpu.pipeline_mode<synchronous>, transform_indices = @transform_4, window_bounds = array<i64: 1, 20>}, {pipeline_mode = #tpu.pipeline_mode<synchronous>, transform_indices = @transform_5, window_bounds = array<i64: 56, 2>}, {pipeline_mode = #tpu.pipeline_mode<synchronous>, transform_indices = @transform_6, window_bounds = array<i64: 2, 56>}, {pipeline_mode = #tpu.pipeline_mode<synchronous>, transform_indices = @transform_7, window_bounds = array<i64: 40, 8>}, {pipeline_mode = #tpu.pipeline_mode<synchronous>, transform_indices = @transform_8, window_bounds = array<i64: 8, 40>}, {pipeline_mode = #tpu.pipeline_mode<synchronous>, transform_indices = @transform_9, window_bounds = array<i64: 20, 200>}, {pipeline_mode = #tpu.pipeline_mode<synchronous>, transform_indices = @transform_10, window_bounds = array<i64: 56, 200>}, {pipeline_mode = #tpu.pipeline_mode<synchronous>, transform_indices = @transform_11, window_bounds = array<i64: 200, 10>}, {pipeline_mode = #tpu.pipeline_mode<synchronous>, transform_indices = @transform_12, window_bounds = array<i64: 1, 10>}, {pipeline_mode = #tpu.pipeline_mode<synchronous>, transform_indices = @transform_13, window_bounds = array<i64: 2, 10>}]} {
    %c0 = arith.constant 0 : index
    %c0_0 = arith.constant 0 : index
    %0 = vector.load %arg1[%c0, %c0_0] : memref<224x100xf32, #tpu.memory_space<vmem>>, vector<224x100xf32>
    %c0_1 = arith.constant 0 : index
    %c0_2 = arith.constant 0 : index
    %1 = vector.load %arg2[%c0_1, %c0_2] : memref<100x20xf32, #tpu.memory_space<vmem>>, vector<100x20xf32>
    %cst = arith.constant dense<0.000000e+00> : vector<224x20xf32>
    %2 = tpu.matmul %0, %1, %cst {dimension_numbers = #tpu.dot_dimension_numbers<[1], [0], [0], [1], [0, 0, 1, 1], [], []>} : vector<224x100xf32>, vector<100x20xf32>, vector<224x20xf32> -> vector<224x20xf32>
    %c0_3 = arith.constant 0 : index
    %c0_4 = arith.constant 0 : index
    %3 = vector.load %arg3[%c0_3, %c0_4] : memref<1x20xf32, #tpu.memory_space<vmem>>, vector<1x20xf32>
    %4 = vector.broadcast %3 : vector<1x20xf32> to vector<224x20xf32>
    %5 = arith.addf %2, %4 : vector<224x20xf32>
    %6 = arith.mulf %5, %5 : vector<224x20xf32>
    %7 = tpu.concatenate %5, %6 in 1 : vector<224x20xf32>, vector<224x20xf32> -> vector<224x40xf32>
    %8 = vector.extract_strided_slice %7 {offsets = [0, 0], sizes = [56, 40], strides = [1, 1]} : vector<224x40xf32> to vector<56x40xf32>
    %9 = vector.extract_strided_slice %7 {offsets = [56, 0], sizes = [56, 40], strides = [1, 1]} : vector<224x40xf32> to vector<56x40xf32>
    %10 = arith.addf %8, %9 : vector<56x40xf32>
    %11 = vector.extract_strided_slice %7 {offsets = [112, 0], sizes = [56, 40], strides = [1, 1]} : vector<224x40xf32> to vector<56x40xf32>
    %12 = arith.addf %10, %11 : vector<56x40xf32>
    %13 = vector.extract_strided_slice %7 {offsets = [168, 0], sizes = [56, 40], strides = [1, 1]} : vector<224x40xf32> to vector<56x40xf32>
    %14 = arith.addf %12, %13 : vector<56x40xf32>
    %c0_5 = arith.constant 0 : index
    %c0_6 = arith.constant 0 : index
    %15 = vector.load %arg7[%c0_5, %c0_6] : memref<2x56xf32, #tpu.memory_space<vmem>>, vector<2x56xf32>
    %cst_7 = arith.constant dense<0.000000e+00> : vector<2x40xf32>
    %16 = tpu.matmul %15, %14, %cst_7 {dimension_numbers = #tpu.dot_dimension_numbers<[1], [0], [0], [1], [0, 0, 1, 1], [], []>} : vector<2x56xf32>, vector<56x40xf32>, vector<2x40xf32> -> vector<2x40xf32>
    %c0_8 = arith.constant 0 : index
    %c0_9 = arith.constant 0 : index
    %17 = vector.load %arg8[%c0_8, %c0_9] : memref<40x8xf32, #tpu.memory_space<vmem>>, vector<40x8xf32>
    %cst_10 = arith.constant dense<0.000000e+00> : vector<2x8xf32>
    %18 = tpu.matmul %16, %17, %cst_10 {dimension_numbers = #tpu.dot_dimension_numbers<[1], [0], [0], [1], [0, 0, 1, 1], [], []>} : vector<2x40xf32>, vector<40x8xf32>, vector<2x8xf32> -> vector<2x8xf32>
    %19 = vector.extract_strided_slice %18 {offsets = [0, 0], sizes = [2, 4], strides = [1, 1]} : vector<2x8xf32> to vector<2x4xf32>
    %cst_11 = arith.constant 2.000000e-03 : f32
    %20 = vector.broadcast %cst_11 : f32 to vector<2x4xf32>
    %21 = arith.mulf %19, %20 : vector<2x4xf32>
    %22 = vector.extract_strided_slice %18 {offsets = [0, 4], sizes = [2, 4], strides = [1, 1]} : vector<2x8xf32> to vector<2x4xf32>
    %cst_12 = arith.constant 2.000000e-03 : f32
    %23 = vector.broadcast %cst_12 : f32 to vector<2x4xf32>
    %24 = arith.mulf %22, %23 : vector<2x4xf32>
    %25 = arith.mulf %21, %21 : vector<2x4xf32>
    %26 = arith.subf %24, %25 : vector<2x4xf32>
    %cst_13 = arith.constant 9.99999974E-6 : f32
    %27 = vector.broadcast %cst_13 : f32 to vector<2x4xf32>
    %28 = arith.addf %26, %27 : vector<2x4xf32>
    %29 = math.rsqrt %28 : vector<2x4xf32>
    %30 = tpu.concatenate %21, %29 in 1 : vector<2x4xf32>, vector<2x4xf32> -> vector<2x8xf32>
    %c0_14 = arith.constant 0 : index
    %c0_15 = arith.constant 0 : index
    %31 = vector.load %arg9[%c0_14, %c0_15] : memref<8x40xf32, #tpu.memory_space<vmem>>, vector<8x40xf32>
    %cst_16 = arith.constant dense<0.000000e+00> : vector<2x40xf32>
    %32 = tpu.matmul %30, %31, %cst_16 {dimension_numbers = #tpu.dot_dimension_numbers<[1], [0], [0], [1], [0, 0, 1, 1], [], []>} : vector<2x8xf32>, vector<8x40xf32>, vector<2x40xf32> -> vector<2x40xf32>
    %33 = vector.extract_strided_slice %32 {offsets = [0, 20], sizes = [2, 20], strides = [1, 1]} : vector<2x40xf32> to vector<2x20xf32>
    %c0_17 = arith.constant 0 : index
    %c0_18 = arith.constant 0 : index
    %34 = vector.load %arg4[%c0_17, %c0_18] : memref<1x20xf32, #tpu.memory_space<vmem>>, vector<1x20xf32>
    %35 = vector.broadcast %34 : vector<1x20xf32> to vector<2x20xf32>
    %36 = arith.mulf %33, %35 : vector<2x20xf32>
    %c0_19 = arith.constant 0 : index
    %c0_20 = arith.constant 0 : index
    %37 = vector.load %arg5[%c0_19, %c0_20] : memref<1x20xf32, #tpu.memory_space<vmem>>, vector<1x20xf32>
    %38 = vector.extract_strided_slice %32 {offsets = [0, 0], sizes = [2, 20], strides = [1, 1]} : vector<2x40xf32> to vector<2x20xf32>
    %39 = arith.mulf %38, %36 : vector<2x20xf32>
    %40 = vector.broadcast %37 : vector<1x20xf32> to vector<2x20xf32>
    %41 = arith.subf %40, %39 : vector<2x20xf32>
    %c0_21 = arith.constant 0 : index
    %c0_22 = arith.constant 0 : index
    %42 = vector.load %arg6[%c0_21, %c0_22] : memref<56x2xf32, #tpu.memory_space<vmem>>, vector<56x2xf32>
    %43 = tpu.concatenate %36, %41 in 1 : vector<2x20xf32>, vector<2x20xf32> -> vector<2x40xf32>
    %cst_23 = arith.constant dense<0.000000e+00> : vector<56x40xf32>
    %44 = tpu.matmul %42, %43, %cst_23 {dimension_numbers = #tpu.dot_dimension_numbers<[1], [0], [0], [1], [0, 0, 1, 1], [], []>} : vector<56x2xf32>, vector<2x40xf32>, vector<56x40xf32> -> vector<56x40xf32>
    %45 = vector.extract_strided_slice %44 {offsets = [0, 0], sizes = [56, 20], strides = [1, 1]} : vector<56x40xf32> to vector<56x20xf32>
    %46 = vector.extract_strided_slice %44 {offsets = [0, 20], sizes = [56, 20], strides = [1, 1]} : vector<56x40xf32> to vector<56x20xf32>
    %47 = vector.extract_strided_slice %5 {offsets = [0, 0], sizes = [56, 20], strides = [1, 1]} : vector<224x20xf32> to vector<56x20xf32>
    %48 = arith.mulf %47, %45 : vector<56x20xf32>
    %49 = arith.addf %48, %46 : vector<56x20xf32>
    %50 = vector.extract_strided_slice %5 {offsets = [56, 0], sizes = [56, 20], strides = [1, 1]} : vector<224x20xf32> to vector<56x20xf32>
    %51 = arith.mulf %50, %45 : vector<56x20xf32>
    %52 = arith.addf %51, %46 : vector<56x20xf32>
    %53 = arith.maximumf %49, %52 : vector<56x20xf32>
    %54 = vector.extract_strided_slice %5 {offsets = [112, 0], sizes = [56, 20], strides = [1, 1]} : vector<224x20xf32> to vector<56x20xf32>
    %55 = arith.mulf %54, %45 : vector<56x20xf32>
    %56 = arith.addf %55, %46 : vector<56x20xf32>
    %57 = arith.maximumf %53, %56 : vector<56x20xf32>
    %58 = vector.extract_strided_slice %5 {offsets = [168, 0], sizes = [56, 20], strides = [1, 1]} : vector<224x20xf32> to vector<56x20xf32>
    %59 = arith.mulf %58, %45 : vector<56x20xf32>
    %60 = arith.addf %59, %46 : vector<56x20xf32>
    %61 = arith.maximumf %57, %60 : vector<56x20xf32>
    %cst_24 = arith.constant 0.000000e+00 : f32
    %62 = vector.broadcast %cst_24 : f32 to vector<56x20xf32>
    %63 = arith.maximumf %61, %62 : vector<56x20xf32>
    %c0_25 = arith.constant 0 : index
    %c0_26 = arith.constant 0 : index
    %64 = vector.load %arg10[%c0_25, %c0_26] : memref<20x200xf32, #tpu.memory_space<vmem>>, vector<20x200xf32>
    %cst_27 = arith.constant dense<0.000000e+00> : vector<56x200xf32>
    %65 = tpu.matmul %63, %64, %cst_27 {dimension_numbers = #tpu.dot_dimension_numbers<[1], [0], [0], [1], [0, 0, 1, 1], [], []>} : vector<56x20xf32>, vector<20x200xf32>, vector<56x200xf32> -> vector<56x200xf32>
    %c0_28 = arith.constant 0 : index
    %c0_29 = arith.constant 0 : index
    %66 = vector.load %arg11[%c0_28, %c0_29] : memref<56x200xf32, #tpu.memory_space<vmem>>, vector<56x200xf32>
    %67 = arith.mulf %65, %66 : vector<56x200xf32>
    %c0_30 = arith.constant 0 : index
    %c0_31 = arith.constant 0 : index
    %68 = vector.load %arg12[%c0_30, %c0_31] : memref<200x10xf32, #tpu.memory_space<vmem>>, vector<200x10xf32>
    %cst_32 = arith.constant dense<0.000000e+00> : vector<56x10xf32>
    %69 = tpu.matmul %67, %68, %cst_32 {dimension_numbers = #tpu.dot_dimension_numbers<[1], [0], [0], [1], [0, 0, 1, 1], [], []>} : vector<56x200xf32>, vector<200x10xf32>, vector<56x10xf32> -> vector<56x10xf32>
    %c0_33 = arith.constant 0 : index
    %c0_34 = arith.constant 0 : index
    %70 = vector.load %arg7[%c0_33, %c0_34] : memref<2x56xf32, #tpu.memory_space<vmem>>, vector<2x56xf32>
    %cst_35 = arith.constant dense<0.000000e+00> : vector<2x10xf32>
    %71 = tpu.matmul %70, %69, %cst_35 {dimension_numbers = #tpu.dot_dimension_numbers<[1], [0], [0], [1], [0, 0, 1, 1], [], []>} : vector<2x56xf32>, vector<56x10xf32>, vector<2x10xf32> -> vector<2x10xf32>
    %c0_36 = arith.constant 0 : index
    %c0_37 = arith.constant 0 : index
    %72 = vector.load %arg13[%c0_36, %c0_37] : memref<1x10xf32, #tpu.memory_space<vmem>>, vector<1x10xf32>
    %73 = vector.broadcast %72 : vector<1x10xf32> to vector<2x10xf32>
    %74 = arith.addf %71, %73 : vector<2x10xf32>
    %c0_38 = arith.constant 0 : index
    %c0_39 = arith.constant 0 : index
    %75 = vector.load %arg14[%c0_38, %c0_39] : memref<2x10xf32, #tpu.memory_space<vmem>>, vector<2x10xf32>
    tpu.vector_store %arg14[%c0_38, %c0_39], %74 {strides = array<i32>} : memref<2x10xf32, #tpu.memory_space<vmem>>, vector<2x10xf32>,
    return
  }
  func.func @transform_0(%arg0: i32) -> (i32, i32) {
    %c0_i32 = arith.constant 0 : i32
    %c0_i32_0 = arith.constant 0 : i32
    %c0_i32_1 = arith.constant 0 : i32
    return %c0_i32, %c0_i32_0 : i32, i32
  }
  func.func @transform_1(%arg0: i32) -> (i32, i32) {
    %c0_i32 = arith.constant 0 : i32
    %c0_i32_0 = arith.constant 0 : i32
    %c0_i32_1 = arith.constant 0 : i32
    return %c0_i32, %c0_i32_0 : i32, i32
  }
  func.func @transform_2(%arg0: i32) -> (i32, i32) {
    %c0_i32 = arith.constant 0 : i32
    %c0_i32_0 = arith.constant 0 : i32
    %c0_i32_1 = arith.constant 0 : i32
    return %c0_i32, %c0_i32_0 : i32, i32
  }
  func.func @transform_3(%arg0: i32) -> (i32, i32) {
    %c0_i32 = arith.constant 0 : i32
    %c0_i32_0 = arith.constant 0 : i32
    %c0_i32_1 = arith.constant 0 : i32
    return %c0_i32, %c0_i32_0 : i32, i32
  }
  func.func @transform_4(%arg0: i32) -> (i32, i32) {
    %c0_i32 = arith.constant 0 : i32
    %c0_i32_0 = arith.constant 0 : i32
    %c0_i32_1 = arith.constant 0 : i32
    return %c0_i32, %c0_i32_0 : i32, i32
  }
  func.func @transform_5(%arg0: i32) -> (i32, i32) {
    %c0_i32 = arith.constant 0 : i32
    %c0_i32_0 = arith.constant 0 : i32
    %c0_i32_1 = arith.constant 0 : i32
    return %c0_i32, %c0_i32_0 : i32, i32
  }
  func.func @transform_6(%arg0: i32) -> (i32, i32) {
    %c0_i32 = arith.constant 0 : i32
    %c0_i32_0 = arith.constant 0 : i32
    %c0_i32_1 = arith.constant 0 : i32
    return %c0_i32, %c0_i32_0 : i32, i32
  }
  func.func @transform_7(%arg0: i32) -> (i32, i32) {
    %c0_i32 = arith.constant 0 : i32
    %c0_i32_0 = arith.constant 0 : i32
    %c0_i32_1 = arith.constant 0 : i32
    return %c0_i32, %c0_i32_0 : i32, i32
  }
  func.func @transform_8(%arg0: i32) -> (i32, i32) {
    %c0_i32 = arith.constant 0 : i32
    %c0_i32_0 = arith.constant 0 : i32
    %c0_i32_1 = arith.constant 0 : i32
    return %c0_i32, %c0_i32_0 : i32, i32
  }
  func.func @transform_9(%arg0: i32) -> (i32, i32) {
    %c0_i32 = arith.constant 0 : i32
    %c0_i32_0 = arith.constant 0 : i32
    %c0_i32_1 = arith.constant 0 : i32
    return %c0_i32, %c0_i32_0 : i32, i32
  }
  func.func @transform_10(%arg0: i32) -> (i32, i32) {
    %c0_i32 = arith.constant 0 : i32
    %c0_i32_0 = arith.constant 0 : i32
    %c0_i32_1 = arith.constant 0 : i32
    return %c0_i32, %c0_i32_0 : i32, i32
  }
  func.func @transform_11(%arg0: i32) -> (i32, i32) {
    %c0_i32 = arith.constant 0 : i32
    %c0_i32_0 = arith.constant 0 : i32
    %c0_i32_1 = arith.constant 0 : i32
    return %c0_i32, %c0_i32_0 : i32, i32
  }
  func.func @transform_12(%arg0: i32) -> (i32, i32) {
    %c0_i32 = arith.constant 0 : i32
    %c0_i32_0 = arith.constant 0 : i32
    %c0_i32_1 = arith.constant 0 : i32
    return %c0_i32, %c0_i32_0 : i32, i32
  }
  func.func @transform_13(%arg0: i32) -> (i32, i32) {
    %c0_i32 = arith.constant 0 : i32
    %c0_i32_0 = arith.constant 0 : i32
    %c0_i32_1 = arith.constant 0 : i32
    return %c0_i32, %c0_i32_0 : i32, i32
  }
}

</mosaic_0001>

<llo_original>
// kernel: tpu_custom_call.1
$region0: #{tpu_custom_call.1}
  #allocation0 [shape = 'u32[]', space=smem, size = 0x4, offset = 0x4, fixed_abs, tag = 'smem constant byte address 0x4 - core index']
  #allocation1 [shape = 'u32[72,128]{1,0:T(1,128)}', space=vmem, size = 0x9000, scoped, tag = 'internal scratch']
  %s0 = inlined_call_operand.vmem [shape: f32[224,100], index: 0, kind: input, shape index: {}]
  %s1 = inlined_call_operand.vmem [shape: f32[100,20], index: 1, kind: input, shape index: {}]
  %s2 = inlined_call_operand.vmem [shape: f32[1,20], index: 2, kind: input, shape index: {}]
  %s3 = inlined_call_operand.vmem [shape: f32[1,20], index: 3, kind: input, shape index: {}]
  %s4 = inlined_call_operand.vmem [shape: f32[1,20], index: 4, kind: input, shape index: {}]
  %s5 = inlined_call_operand.vmem [shape: f32[56,2], index: 5, kind: input, shape index: {}]
  %s6 = inlined_call_operand.vmem [shape: f32[2,56], index: 6, kind: input, shape index: {}]
  %s7 = inlined_call_operand.vmem [shape: f32[40,8], index: 7, kind: input, shape index: {}]
  %s8 = inlined_call_operand.vmem [shape: f32[8,40], index: 8, kind: input, shape index: {}]
  %s9 = inlined_call_operand.vmem [shape: f32[20,200], index: 9, kind: input, shape index: {}]
  %s10 = inlined_call_operand.vmem [shape: f32[56,200], index: 10, kind: input, shape index: {}]
  %s11 = inlined_call_operand.vmem [shape: f32[200,10], index: 11, kind: input, shape index: {}]
  %s12 = inlined_call_operand.vmem [shape: f32[1,10], index: 12, kind: input, shape index: {}]
  %s13 = inlined_call_operand.hbm [shape: f32[2,10], index: 13, kind: output, shape index: {}]
  %s14 = sld [smem:[#allocation0]]
  $region62: #{tpu_custom_call.1} parent=0
    _
  %s16 = ssub.s32 1, %s14
  %s17 = scalar_select 0, %s16, %s14
  $region1: #{tpu_custom_call.1} parent=0
    #allocation2 [shape = 'u8[1024]{0}', space=vmem, size = 0x400, scoped, tag = 'output window, operand 0, single buffered']
    #allocation3 [shape = 's32[1]{0}', space=sflag, size = 0x4, scoped, tag = 'scoped memory for tpu_custom_call.1']
    %18 = vsyncpa [#allocation3], 0
    // Predicated region
    $region2: #{tpu_custom_call.1} parent=1 // pred_check
      _
    $region3: #{tpu_custom_call.1} parent=1 // pred_check_branch
      %20 = sbr.rel (0) target = $region5
    $region4: #{tpu_custom_call.1} parent=1 // pred_region
      _
    $region5: #{tpu_custom_call.1} parent=1 // pred_fallthru
      _
    // Predicated region
    $region6: #{tpu_custom_call.1} parent=1 // pred_check
      _
    $region7: #{tpu_custom_call.1} parent=1 // pred_check_branch
      %22 = sbr.rel (0) target = $region9
    $region8: #{tpu_custom_call.1} parent=1 // pred_region
      _
    $region9: #{tpu_custom_call.1} parent=1 // pred_fallthru
      _
    // Predicated region
    $region10: #{tpu_custom_call.1} parent=1 // pred_check
      _
    $region11: #{tpu_custom_call.1} parent=1 // pred_check_branch
      %24 = sbr.rel (0) target = $region13
    $region12: #{tpu_custom_call.1} parent=1 // pred_region
      _
    $region13: #{tpu_custom_call.1} parent=1 // pred_fallthru
      _
    // Predicated region
    $region14: #{tpu_custom_call.1} parent=1 // pred_check
      _
    $region15: #{tpu_custom_call.1} parent=1 // pred_check_branch
      %26 = sbr.rel (0) target = $region17
    $region16: #{tpu_custom_call.1} parent=1 // pred_region
      _
    $region17: #{tpu_custom_call.1} parent=1 // pred_fallthru
      _
    // Predicated region
    $region18: #{tpu_custom_call.1} parent=1 // pred_check
      _
    $region19: #{tpu_custom_call.1} parent=1 // pred_check_branch
      %28 = sbr.rel (0) target = $region21
    $region20: #{tpu_custom_call.1} parent=1 // pred_region
      _
    $region21: #{tpu_custom_call.1} parent=1 // pred_fallthru
      _
    // Predicated region
    $region22: #{tpu_custom_call.1} parent=1 // pred_check
      _
    $region23: #{tpu_custom_call.1} parent=1 // pred_check_branch
      %30 = sbr.rel (0) target = $region25
    $region24: #{tpu_custom_call.1} parent=1 // pred_region
      _
    $region25: #{tpu_custom_call.1} parent=1 // pred_fallthru
      _
    // Predicated region
    $region26: #{tpu_custom_call.1} parent=1 // pred_check
      _
    $region27: #{tpu_custom_call.1} parent=1 // pred_check_branch
      %32 = sbr.rel (0) target = $region29
    $region28: #{tpu_custom_call.1} parent=1 // pred_region
      _
    $region29: #{tpu_custom_call.1} parent=1 // pred_fallthru
      _
    // Predicated region
    $region30: #{tpu_custom_call.1} parent=1 // pred_check
      _
    $region31: #{tpu_custom_call.1} parent=1 // pred_check_branch
      %34 = sbr.rel (0) target = $region33
    $region32: #{tpu_custom_call.1} parent=1 // pred_region
      _
    $region33: #{tpu_custom_call.1} parent=1 // pred_fallthru
      _
    // Predicated region
    $region34: #{tpu_custom_call.1} parent=1 // pred_check
      _
    $region35: #{tpu_custom_call.1} parent=1 // pred_check_branch
      %36 = sbr.rel (0) target = $region37
    $region36: #{tpu_custom_call.1} parent=1 // pred_region
      _
    $region37: #{tpu_custom_call.1} parent=1 // pred_fallthru
      _
    // Predicated region
    $region38: #{tpu_custom_call.1} parent=1 // pred_check
      _
    $region39: #{tpu_custom_call.1} parent=1 // pred_check_branch
      %38 = sbr.rel (0) target = $region41
    $region40: #{tpu_custom_call.1} parent=1 // pred_region
      _
    $region41: #{tpu_custom_call.1} parent=1 // pred_fallthru
      _
    // Predicated region
    $region42: #{tpu_custom_call.1} parent=1 // pred_check
      _
    $region43: #{tpu_custom_call.1} parent=1 // pred_check_branch
      %40 = sbr.rel (0) target = $region45
    $region44: #{tpu_custom_call.1} parent=1 // pred_region
      _
    $region45: #{tpu_custom_call.1} parent=1 // pred_fallthru
      _
    // Predicated region
    $region46: #{tpu_custom_call.1} parent=1 // pred_check
      _
    $region47: #{tpu_custom_call.1} parent=1 // pred_check_branch
      %42 = sbr.rel (0) target = $region49
    $region48: #{tpu_custom_call.1} parent=1 // pred_region
      _
    $region49: #{tpu_custom_call.1} parent=1 // pred_fallthru
      _
    // Predicated region
    $region50: #{tpu_custom_call.1} parent=1 // pred_check
      _
    $region51: #{tpu_custom_call.1} parent=1 // pred_check_branch
      %44 = sbr.rel (0) target = $region53
    $region52: #{tpu_custom_call.1} parent=1 // pred_region
      _
    $region53: #{tpu_custom_call.1} parent=1 // pred_fallthru
      _
    %v45 = vld [vmem:[%s0] sm:$0xff]
    %v46 = vld [vmem:[%s0 + $0x8] sm:$0xff]
    %v47 = vld [vmem:[%s0 + $0x10] sm:$0xff]
    %v48 = vld [vmem:[%s0 + $0x18] sm:$0xff]
    %v49 = vld [vmem:[%s0 + $0x20] sm:$0xff]
    %v50 = vld [vmem:[%s0 + $0x28] sm:$0xff]
    %v51 = vld [vmem:[%s0 + $0x30] sm:$0xff]
    %v52 = vld [vmem:[%s0 + $0x38] sm:$0xff]
    %v53 = vld [vmem:[%s0 + $0x40] sm:$0xff]
    %v54 = vld [vmem:[%s0 + $0x48] sm:$0xff]
    %v55 = vld [vmem:[%s0 + $0x50] sm:$0xff]
    %v56 = vld [vmem:[%s0 + $0x58] sm:$0xff]
    %v57 = vld [vmem:[%s0 + $0x60] sm:$0xff]
    %v58 = vld [vmem:[%s0 + $0x68] sm:$0xff]
    %v59 = vld [vmem:[%s0 + $0x70] sm:$0xff]
    %v60 = vld [vmem:[%s0 + $0x78] sm:$0xff]
    %v61 = vld [vmem:[%s0 + $0x80] sm:$0xff]
    %v62 = vld [vmem:[%s0 + $0x88] sm:$0xff]
    %v63 = vld [vmem:[%s0 + $0x90] sm:$0xff]
    %v64 = vld [vmem:[%s0 + $0x98] sm:$0xff]
    %v65 = vld [vmem:[%s0 + $0xa0] sm:$0xff]
    %v66 = vld [vmem:[%s0 + $0xa8] sm:$0xff]
    %v67 = vld [vmem:[%s0 + $0xb0] sm:$0xff]
    %v68 = vld [vmem:[%s0 + $0xb8] sm:$0xff]
    %v69 = vld [vmem:[%s0 + $0xc0] sm:$0xff]
    %v70 = vld [vmem:[%s0 + $0xc8] sm:$0xff]
    %v71 = vld [vmem:[%s0 + $0xd0] sm:$0xff]
    %v72 = vld [vmem:[%s0 + $0xd8] sm:$0xff]
    %v73 = vld [vmem:[%s1] sm:$0xff]
    %v74 = vld [vmem:[%s1 + $0x8] sm:$0xff]
    %v75 = vld [vmem:[%s1 + $0x10] sm:$0xff]
    %v76 = vld [vmem:[%s1 + $0x18] sm:$0xff]
    %v77 = vld [vmem:[%s1 + $0x20] sm:$0xff]
    %v78 = vld [vmem:[%s1 + $0x28] sm:$0xff]
    %v79 = vld [vmem:[%s1 + $0x30] sm:$0xff]
    %v80 = vld [vmem:[%s1 + $0x38] sm:$0xff]
    %v81 = vld [vmem:[%s1 + $0x40] sm:$0xff]
    %v82 = vld [vmem:[%s1 + $0x48] sm:$0xff]
    %v83 = vld [vmem:[%s1 + $0x50] sm:$0xff]
    %v84 = vld [vmem:[%s1 + $0x58] sm:$0xff]
    %v85 = vld [vmem:[%s1 + $0x60] sm:$0xf]
    %v86 = vld [vmem:[%s2] sm:$0x1]
    %v88 = vperm.slane %v86, 0
    %vm90 = vcmask 818176
    %v92 = vsel %vm90, %v45, 0
    %v95 = vsel %vm90, %v46, 0
    %v98 = vsel %vm90, %v47, 0
    %v101 = vsel %vm90, %v48, 0
    %v104 = vsel %vm90, %v49, 0
    %v107 = vsel %vm90, %v50, 0
    %v110 = vsel %vm90, %v51, 0
    %v113 = vsel %vm90, %v52, 0
    %v116 = vsel %vm90, %v53, 0
    %v119 = vsel %vm90, %v54, 0
    %v122 = vsel %vm90, %v55, 0
    %v125 = vsel %vm90, %v56, 0
    %v128 = vsel %vm90, %v57, 0
    %v131 = vsel %vm90, %v58, 0
    %v134 = vsel %vm90, %v59, 0
    %v137 = vsel %vm90, %v60, 0
    %v140 = vsel %vm90, %v61, 0
    %v143 = vsel %vm90, %v62, 0
    %v146 = vsel %vm90, %v63, 0
    %v149 = vsel %vm90, %v64, 0
    %v152 = vsel %vm90, %v65, 0
    %v155 = vsel %vm90, %v66, 0
    %v158 = vsel %vm90, %v67, 0
    %v161 = vsel %vm90, %v68, 0
    %v164 = vsel %vm90, %v69, 0
    %v167 = vsel %vm90, %v70, 0
    %v170 = vsel %vm90, %v71, 0
    %v173 = vsel %vm90, %v72, 0
    %vm175 = vcmask 1043456
    %v177 = vsel %vm175, %v85, 0
    %179 = vmatpush.msra.mxu0 0.0
    %180 = vmatpush.msra.mxu0 0.0
    %181 = vmatpush.msra.mxu0 0.0
    %182 = vmatpush.msra.mxu0 %v177
    %183 = vmatpush.msra.mxu0 %v84
    %184 = vmatpush.msra.mxu0 %v83
    %185 = vmatpush.msra.mxu0 %v82
    %186 = vmatpush.msra.mxu0 %v81
    %187 = vmatpush.msra.mxu0 %v80
    %188 = vmatpush.msra.mxu0 %v79
    %189 = vmatpush.msra.mxu0 %v78
    %190 = vmatpush.msra.mxu0 %v77
    %191 = vmatpush.msra.mxu0 %v76
    %192 = vmatpush.msra.mxu0 %v75
    %193 = vmatpush.msra.mxu0 %v74
    %194 = vmatpush.msra.mxu0 %v73
    %195 = vmatmul.f32.gmra.mxu0 %v92
    %v196 = vpop.f32.mrf.mxu0
    %v197 = vadd.f32 %v88, %v196
    %198 = vmatmul.f32.gmra.mxu0 %v95
    %v199 = vpop.f32.mrf.mxu0
    %v200 = vadd.f32 %v88, %v199
    %201 = vmatmul.f32.gmra.mxu0 %v98
    %v202 = vpop.f32.mrf.mxu0
    %v203 = vadd.f32 %v88, %v202
    %204 = vmatmul.f32.gmra.mxu0 %v101
    %v205 = vpop.f32.mrf.mxu0
    %v206 = vadd.f32 %v88, %v205
    %207 = vmatmul.f32.gmra.mxu0 %v104
    %v208 = vpop.f32.mrf.mxu0
    %v209 = vadd.f32 %v88, %v208
    %210 = vmatmul.f32.gmra.mxu0 %v107
    %v211 = vpop.f32.mrf.mxu0
    %v212 = vadd.f32 %v88, %v211
    %213 = vmatmul.f32.gmra.mxu0 %v110
    %v214 = vpop.f32.mrf.mxu0
    %v215 = vadd.f32 %v88, %v214
    %216 = vmatmul.f32.gmra.mxu0 %v113
    %v217 = vpop.f32.mrf.mxu0
    %v218 = vadd.f32 %v88, %v217
    %219 = vmatmul.f32.gmra.mxu0 %v116
    %v220 = vpop.f32.mrf.mxu0
    %v221 = vadd.f32 %v88, %v220
    %222 = vmatmul.f32.gmra.mxu0 %v119
    %v223 = vpop.f32.mrf.mxu0
    %v224 = vadd.f32 %v88, %v223
    %225 = vmatmul.f32.gmra.mxu0 %v122
    %v226 = vpop.f32.mrf.mxu0
    %v227 = vadd.f32 %v88, %v226
    %228 = vmatmul.f32.gmra.mxu0 %v125
    %v229 = vpop.f32.mrf.mxu0
    %v230 = vadd.f32 %v88, %v229
    %231 = vmatmul.f32.gmra.mxu0 %v128
    %v232 = vpop.f32.mrf.mxu0
    %v233 = vadd.f32 %v88, %v232
    %234 = vmatmul.f32.gmra.mxu0 %v131
    %v235 = vpop.f32.mrf.mxu0
    %v236 = vadd.f32 %v88, %v235
    %237 = vmatmul.f32.gmra.mxu0 %v134
    %v238 = vpop.f32.mrf.mxu0
    %v239 = vadd.f32 %v88, %v238
    %240 = vmatmul.f32.gmra.mxu0 %v137
    %v241 = vpop.f32.mrf.mxu0
    %v242 = vadd.f32 %v88, %v241
    %243 = vmatmul.f32.gmra.mxu0 %v140
    %v244 = vpop.f32.mrf.mxu0
    %v245 = vadd.f32 %v88, %v244
    %246 = vmatmul.f32.gmra.mxu0 %v143
    %v247 = vpop.f32.mrf.mxu0
    %v248 = vadd.f32 %v88, %v247
    %249 = vmatmul.f32.gmra.mxu0 %v146
    %v250 = vpop.f32.mrf.mxu0
    %v251 = vadd.f32 %v88, %v250
    %252 = vmatmul.f32.gmra.mxu0 %v149
    %v253 = vpop.f32.mrf.mxu0
    %v254 = vadd.f32 %v88, %v253
    %255 = vmatmul.f32.gmra.mxu0 %v152
    %v256 = vpop.f32.mrf.mxu0
    %v257 = vadd.f32 %v88, %v256
    %258 = vmatmul.f32.gmra.mxu0 %v155
    %v259 = vpop.f32.mrf.mxu0
    %v260 = vadd.f32 %v88, %v259
    %261 = vmatmul.f32.gmra.mxu0 %v158
    %v262 = vpop.f32.mrf.mxu0
    %v263 = vadd.f32 %v88, %v262
    %264 = vmatmul.f32.gmra.mxu0 %v161
    %v265 = vpop.f32.mrf.mxu0
    %v266 = vadd.f32 %v88, %v265
    %267 = vmatmul.f32.gmra.mxu0 %v164
    %v268 = vpop.f32.mrf.mxu0
    %v269 = vadd.f32 %v88, %v268
    %270 = vmatmul.f32.gmra.mxu0 %v167
    %v271 = vpop.f32.mrf.mxu0
    %v272 = vadd.f32 %v88, %v271
    %273 = vmatmul.f32.gmra.mxu0 %v170
    %v274 = vpop.f32.mrf.mxu0
    %v275 = vadd.f32 %v88, %v274
    %276 = vmatmul.f32.gmra.mxu0 %v173
    %v277 = vpop.f32.mrf.mxu0
    %v278 = vadd.f32 %v88, %v277
    %279 = vdwg.mxu0
    %v280 = vmul.f32 %v197, %v197
    %v281 = vmul.f32 %v200, %v200
    %v282 = vmul.f32 %v203, %v203
    %v283 = vmul.f32 %v206, %v206
    %v284 = vmul.f32 %v209, %v209
    %v285 = vmul.f32 %v212, %v212
    %v286 = vmul.f32 %v215, %v215
    %v287 = vmul.f32 %v218, %v218
    %v288 = vmul.f32 %v221, %v221
    %v289 = vmul.f32 %v224, %v224
    %v290 = vmul.f32 %v227, %v227
    %v291 = vmul.f32 %v230, %v230
    %v292 = vmul.f32 %v233, %v233
    %v293 = vmul.f32 %v236, %v236
    %v294 = vmul.f32 %v239, %v239
    %v295 = vmul.f32 %v242, %v242
    %v296 = vmul.f32 %v245, %v245
    %v297 = vmul.f32 %v248, %v248
    %v298 = vmul.f32 %v251, %v251
    %v299 = vmul.f32 %v254, %v254
    %v300 = vmul.f32 %v257, %v257
    %v301 = vmul.f32 %v260, %v260
    %v302 = vmul.f32 %v263, %v263
    %v303 = vmul.f32 %v266, %v266
    %v304 = vmul.f32 %v269, %v269
    %v305 = vmul.f32 %v272, %v272
    %v306 = vmul.f32 %v275, %v275
    %v307 = vmul.f32 %v278, %v278
    %336 = vrot.lane.b32.xlu0 %v280, 20
    %v337 = vpop.permute.xlu0 %336
    %338 = vrot.lane.b32.xlu0 %v281, 20
    %v339 = vpop.permute.xlu0 %338
    %340 = vrot.lane.b32.xlu0 %v282, 20
    %v341 = vpop.permute.xlu0 %340
    %342 = vrot.lane.b32.xlu0 %v283, 20
    %v343 = vpop.permute.xlu0 %342
    %344 = vrot.lane.b32.xlu0 %v284, 20
    %v345 = vpop.permute.xlu0 %344
    %346 = vrot.lane.b32.xlu0 %v285, 20
    %v347 = vpop.permute.xlu0 %346
    %348 = vrot.lane.b32.xlu0 %v286, 20
    %v349 = vpop.permute.xlu0 %348
    %350 = vrot.lane.b32.xlu0 %v287, 20
    %v351 = vpop.permute.xlu0 %350
    %352 = vrot.lane.b32.xlu0 %v288, 20
    %v353 = vpop.permute.xlu0 %352
    %354 = vrot.lane.b32.xlu0 %v289, 20
    %v355 = vpop.permute.xlu0 %354
    %356 = vrot.lane.b32.xlu0 %v290, 20
    %v357 = vpop.permute.xlu0 %356
    %358 = vrot.lane.b32.xlu0 %v291, 20
    %v359 = vpop.permute.xlu0 %358
    %360 = vrot.lane.b32.xlu0 %v292, 20
    %v361 = vpop.permute.xlu0 %360
    %362 = vrot.lane.b32.xlu0 %v293, 20
    %v363 = vpop.permute.xlu0 %362
    %364 = vrot.lane.b32.xlu0 %v294, 20
    %v365 = vpop.permute.xlu0 %364
    %366 = vrot.lane.b32.xlu0 %v295, 20
    %v367 = vpop.permute.xlu0 %366
    %368 = vrot.lane.b32.xlu0 %v296, 20
    %v369 = vpop.permute.xlu0 %368
    %370 = vrot.lane.b32.xlu0 %v297, 20
    %v371 = vpop.permute.xlu0 %370
    %372 = vrot.lane.b32.xlu0 %v298, 20
    %v373 = vpop.permute.xlu0 %372
    %374 = vrot.lane.b32.xlu0 %v299, 20
    %v375 = vpop.permute.xlu0 %374
    %376 = vrot.lane.b32.xlu0 %v300, 20
    %v377 = vpop.permute.xlu0 %376
    %378 = vrot.lane.b32.xlu0 %v301, 20
    %v379 = vpop.permute.xlu0 %378
    %380 = vrot.lane.b32.xlu0 %v302, 20
    %v381 = vpop.permute.xlu0 %380
    %382 = vrot.lane.b32.xlu0 %v303, 20
    %v383 = vpop.permute.xlu0 %382
    %384 = vrot.lane.b32.xlu0 %v304, 20
    %v385 = vpop.permute.xlu0 %384
    %386 = vrot.lane.b32.xlu0 %v305, 20
    %v387 = vpop.permute.xlu0 %386
    %388 = vrot.lane.b32.xlu0 %v306, 20
    %v389 = vpop.permute.xlu0 %388
    %390 = vrot.lane.b32.xlu0 %v307, 20
    %v391 = vpop.permute.xlu0 %390
    %vm420 = vcmask 162816
    %v421 = vsel %vm420, %v197, %v337
    %v422 = vsel %vm420, %v200, %v339
    %v423 = vsel %vm420, %v203, %v341
    %v424 = vsel %vm420, %v206, %v343
    %v425 = vsel %vm420, %v209, %v345
    %v426 = vsel %vm420, %v212, %v347
    %v427 = vsel %vm420, %v215, %v349
    %v428 = vsel %vm420, %v218, %v351
    %v429 = vsel %vm420, %v221, %v353
    %v430 = vsel %vm420, %v224, %v355
    %v431 = vsel %vm420, %v227, %v357
    %v432 = vsel %vm420, %v230, %v359
    %v433 = vsel %vm420, %v233, %v361
    %v434 = vsel %vm420, %v236, %v363
    %v435 = vsel %vm420, %v239, %v365
    %v436 = vsel %vm420, %v242, %v367
    %v437 = vsel %vm420, %v245, %v369
    %v438 = vsel %vm420, %v248, %v371
    %v439 = vsel %vm420, %v251, %v373
    %v440 = vsel %vm420, %v254, %v375
    %v441 = vsel %vm420, %v257, %v377
    %v442 = vsel %vm420, %v260, %v379
    %v443 = vsel %vm420, %v263, %v381
    %v444 = vsel %vm420, %v266, %v383
    %v445 = vsel %vm420, %v269, %v385
    %v446 = vsel %vm420, %v272, %v387
    %v447 = vsel %vm420, %v275, %v389
    %v448 = vsel %vm420, %v278, %v391
    %v449 = vadd.f32 %v421, %v428
    %v450 = vadd.f32 %v422, %v429
    %v451 = vadd.f32 %v423, %v430
    %v452 = vadd.f32 %v424, %v431
    %v453 = vadd.f32 %v425, %v432
    %v454 = vadd.f32 %v426, %v433
    %v455 = vadd.f32 %v427, %v434
    %v456 = vadd.f32 %v449, %v435
    %v457 = vadd.f32 %v450, %v436
    %v458 = vadd.f32 %v451, %v437
    %v459 = vadd.f32 %v452, %v438
    %v460 = vadd.f32 %v453, %v439
    %v461 = vadd.f32 %v454, %v440
    %v462 = vadd.f32 %v455, %v441
    %v463 = vadd.f32 %v456, %v442
    %v464 = vadd.f32 %v457, %v443
    %v465 = vadd.f32 %v458, %v444
    %v466 = vadd.f32 %v459, %v445
    %v467 = vadd.f32 %v460, %v446
    %v468 = vadd.f32 %v461, %v447
    %v469 = vadd.f32 %v462, %v448
    %v470 = vld [vmem:[%s6] sm:$0x3]
    %vm471 = vcmask 457728
    %v473 = vsel %vm471, %v470, 0
    %475 = vmatpush.msra.mxu0 0.0
    %476 = vmatpush.msra.mxu0 0.0
    %477 = vmatpush.msra.mxu0 0.0
    %478 = vmatpush.msra.mxu0 0.0
    %479 = vmatpush.msra.mxu0 0.0
    %480 = vmatpush.msra.mxu0 0.0
    %481 = vmatpush.msra.mxu0 0.0
    %482 = vmatpush.msra.mxu0 0.0
    %483 = vmatpush.msra.mxu0 0.0
    %484 = vmatpush.msra.mxu0 %v469
    %485 = vmatpush.msra.mxu0 %v468
    %486 = vmatpush.msra.mxu0 %v467
    %487 = vmatpush.msra.mxu0 %v466
    %488 = vmatpush.msra.mxu0 %v465
    %489 = vmatpush.msra.mxu0 %v464
    %490 = vmatpush.msra.mxu0 %v463
    %491 = vmatmul.f32.gmra.mxu0 %v473
    %v492 = vpop.f32.mrf.mxu0
    %v493 = vadd.f32 0.0, %v492
    %494 = vdwg.mxu0
    %v495 = vld [vmem:[%s7] sm:$0xff]
    %v496 = vld [vmem:[%s7 + $0x8] sm:$0xff]
    %v497 = vld [vmem:[%s7 + $0x10] sm:$0xff]
    %v498 = vld [vmem:[%s7 + $0x18] sm:$0xff]
    %v499 = vld [vmem:[%s7 + $0x20] sm:$0xff]
    %vm500 = vcmask 326656
    %v502 = vsel %vm500, %v493, 0
    %504 = vmatpush.msra.mxu0 0.0
    %505 = vmatpush.msra.mxu0 0.0
    %506 = vmatpush.msra.mxu0 0.0
    %507 = vmatpush.msra.mxu0 0.0
    %508 = vmatpush.msra.mxu0 0.0
    %509 = vmatpush.msra.mxu0 0.0
    %510 = vmatpush.msra.mxu0 0.0
    %511 = vmatpush.msra.mxu0 0.0
    %512 = vmatpush.msra.mxu0 0.0
    %513 = vmatpush.msra.mxu0 0.0
    %514 = vmatpush.msra.mxu0 0.0
    %515 = vmatpush.msra.mxu0 %v499
    %516 = vmatpush.msra.mxu0 %v498
    %517 = vmatpush.msra.mxu0 %v497
    %518 = vmatpush.msra.mxu0 %v496
    %519 = vmatpush.msra.mxu0 %v495
    %520 = vmatmul.f32.gmra.mxu0 %v502
    %v521 = vpop.f32.mrf.mxu0
    %v522 = vadd.f32 0.0, %v521
    %523 = vdwg.mxu0
    %v524 = vmul.f32 %v522, 0.002
    %v525 = vmul.f32 %v524, %v524
    %527 = vrot.lane.b32.xlu0 %v525, 4
    %v528 = vpop.permute.xlu0 %527
    %v530 = vsub.f32 %v524, %v528
    %v531 = vadd.f32 %v530, 1e-05
    %v532 = vrsqrt.pop %v531
    %v533 = vmul.f32 %v532, %v531
    %v534 = vmul.f32 %v533, %v532
    %v535 = vmul.f32 0.5, %v534
    %v536 = vsub.f32 1.5, %v535
    %v537 = vmul.f32 %v532, %v536
    %vm538 = vweird.f32 %v531
    %vm539 = vweird.f32 %v532
    %vm540 = vmor %vm538, %vm539
    %v541 = vsel %vm540, %v532, %v537
    %vm542 = vcmask 31744
    %v543 = vsel %vm542, %v524, %v541
    %v544 = vld [vmem:[%s8] sm:$0xff]
    %vm545 = vcmask 64512
    %v547 = vsel %vm545, %v543, 0
    %549 = vmatpush.msra.mxu0 0.0
    %550 = vmatpush.msra.mxu0 0.0
    %551 = vmatpush.msra.mxu0 0.0
    %552 = vmatpush.msra.mxu0 0.0
    %553 = vmatpush.msra.mxu0 0.0
    %554 = vmatpush.msra.mxu0 0.0
    %555 = vmatpush.msra.mxu0 0.0
    %556 = vmatpush.msra.mxu0 0.0
    %557 = vmatpush.msra.mxu0 0.0
    %558 = vmatpush.msra.mxu0 0.0
    %559 = vmatpush.msra.mxu0 0.0
    %560 = vmatpush.msra.mxu0 0.0
    %561 = vmatpush.msra.mxu0 0.0
    %562 = vmatpush.msra.mxu0 0.0
    %563 = vmatpush.msra.mxu0 0.0
    %564 = vmatpush.msra.mxu0 %v544
    %565 = vmatmul.f32.gmra.mxu0 %v547
    %v566 = vpop.f32.mrf.mxu0
    %v567 = vadd.f32 0.0, %v566
    %568 = vdwg.mxu0
    %v569 = vld [vmem:[%s3] sm:$0x1]
    %v571 = vperm.slane %v569, 0
    %572 = vrot.lane.b32.xlu0 %v571, 20
    %v573 = vpop.permute.xlu0 %572
    %v575 = vmul.f32 %v567, %v573
    %v576 = vld [vmem:[%s4] sm:$0x1]
    %578 = vrot.lane.b32.xlu0 %v575, 108
    %v579 = vpop.permute.xlu0 %578
    %v581 = vmul.f32 %v567, %v579
    %v583 = vperm.slane %v576, 0
    %v585 = vsub.f32 %v583, %v581
    %v586 = vld [vmem:[%s5] sm:$0xff]
    %v587 = vld [vmem:[%s5 + $0x8] sm:$0xff]
    %v588 = vld [vmem:[%s5 + $0x10] sm:$0xff]
    %v589 = vld [vmem:[%s5 + $0x18] sm:$0xff]
    %v590 = vld [vmem:[%s5 + $0x20] sm:$0xff]
    %v591 = vld [vmem:[%s5 + $0x28] sm:$0xff]
    %v592 = vld [vmem:[%s5 + $0x30] sm:$0xff]
    %594 = vrot.lane.b32.xlu0 %v585, 20
    %v595 = vpop.permute.xlu0 %594
    %v597 = vsel %vm420, %v579, %v595
    %vm598 = vcmask 15360
    %v600 = vsel %vm598, %v586, 0
    %v603 = vsel %vm598, %v587, 0
    %v606 = vsel %vm598, %v588, 0
    %v609 = vsel %vm598, %v589, 0
    %v612 = vsel %vm598, %v590, 0
    %v615 = vsel %vm598, %v591, 0
    %v618 = vsel %vm598, %v592, 0
    %vm620 = vcmask 1041408
    %v622 = vsel %vm620, %v597, 0
    %624 = vmatpush.msra.mxu0 0.0
    %625 = vmatpush.msra.mxu0 0.0
    %626 = vmatpush.msra.mxu0 0.0
    %627 = vmatpush.msra.mxu0 0.0
    %628 = vmatpush.msra.mxu0 0.0
    %629 = vmatpush.msra.mxu0 0.0
    %630 = vmatpush.msra.mxu0 0.0
    %631 = vmatpush.msra.mxu0 0.0
    %632 = vmatpush.msra.mxu0 0.0
    %633 = vmatpush.msra.mxu0 0.0
    %634 = vmatpush.msra.mxu0 0.0
    %635 = vmatpush.msra.mxu0 0.0
    %636 = vmatpush.msra.mxu0 0.0
    %637 = vmatpush.msra.mxu0 0.0
    %638 = vmatpush.msra.mxu0 0.0
    %639 = vmatpush.msra.mxu0 %v622
    %640 = vmatmul.f32.gmra.mxu0 %v600
    %v641 = vpop.f32.mrf.mxu0
    %v642 = vadd.f32 0.0, %v641
    %643 = vmatmul.f32.gmra.mxu0 %v603
    %v644 = vpop.f32.mrf.mxu0
    %v645 = vadd.f32 0.0, %v644
    %646 = vmatmul.f32.gmra.mxu0 %v606
    %v647 = vpop.f32.mrf.mxu0
    %v648 = vadd.f32 0.0, %v647
    %649 = vmatmul.f32.gmra.mxu0 %v609
    %v650 = vpop.f32.mrf.mxu0
    %v651 = vadd.f32 0.0, %v650
    %652 = vmatmul.f32.gmra.mxu0 %v612
    %v653 = vpop.f32.mrf.mxu0
    %v654 = vadd.f32 0.0, %v653
    %655 = vmatmul.f32.gmra.mxu0 %v615
    %v656 = vpop.f32.mrf.mxu0
    %v657 = vadd.f32 0.0, %v656
    %658 = vmatmul.f32.gmra.mxu0 %v618
    %v659 = vpop.f32.mrf.mxu0
    %v660 = vadd.f32 0.0, %v659
    %661 = vdwg.mxu0
    %v662 = vmul.f32 %v197, %v642
    %v663 = vmul.f32 %v200, %v645
    %v664 = vmul.f32 %v203, %v648
    %v665 = vmul.f32 %v206, %v651
    %v666 = vmul.f32 %v209, %v654
    %v667 = vmul.f32 %v212, %v657
    %v668 = vmul.f32 %v215, %v660
    %676 = vrot.lane.b32.xlu0 %v642, 108
    %v677 = vpop.permute.xlu0 %676
    %678 = vrot.lane.b32.xlu0 %v645, 108
    %v679 = vpop.permute.xlu0 %678
    %680 = vrot.lane.b32.xlu0 %v648, 108
    %v681 = vpop.permute.xlu0 %680
    %682 = vrot.lane.b32.xlu0 %v651, 108
    %v683 = vpop.permute.xlu0 %682
    %684 = vrot.lane.b32.xlu0 %v654, 108
    %v685 = vpop.permute.xlu0 %684
    %686 = vrot.lane.b32.xlu0 %v657, 108
    %v687 = vpop.permute.xlu0 %686
    %688 = vrot.lane.b32.xlu0 %v660, 108
    %v689 = vpop.permute.xlu0 %688
    %v697 = vadd.f32 %v662, %v677
    %v698 = vadd.f32 %v663, %v679
    %v699 = vadd.f32 %v664, %v681
    %v700 = vadd.f32 %v665, %v683
    %v701 = vadd.f32 %v666, %v685
    %v702 = vadd.f32 %v667, %v687
    %v703 = vadd.f32 %v668, %v689
    %v704 = vmul.f32 %v218, %v642
    %v705 = vmul.f32 %v221, %v645
    %v706 = vmul.f32 %v224, %v648
    %v707 = vmul.f32 %v227, %v651
    %v708 = vmul.f32 %v230, %v654
    %v709 = vmul.f32 %v233, %v657
    %v710 = vmul.f32 %v236, %v660
    %v711 = vadd.f32 %v704, %v677
    %v712 = vadd.f32 %v705, %v679
    %v713 = vadd.f32 %v706, %v681
    %v714 = vadd.f32 %v707, %v683
    %v715 = vadd.f32 %v708, %v685
    %v716 = vadd.f32 %v709, %v687
    %v717 = vadd.f32 %v710, %v689
    %v718 = vmax.f32 %v697, %v711
    %v719 = vmax.f32 %v698, %v712
    %v720 = vmax.f32 %v699, %v713
    %v721 = vmax.f32 %v700, %v714
    %v722 = vmax.f32 %v701, %v715
    %v723 = vmax.f32 %v702, %v716
    %v724 = vmax.f32 %v703, %v717
    %v725 = vmul.f32 %v239, %v642
    %v726 = vmul.f32 %v242, %v645
    %v727 = vmul.f32 %v245, %v648
    %v728 = vmul.f32 %v248, %v651
    %v729 = vmul.f32 %v251, %v654
    %v730 = vmul.f32 %v254, %v657
    %v731 = vmul.f32 %v257, %v660
    %v732 = vadd.f32 %v725, %v677
    %v733 = vadd.f32 %v726, %v679
    %v734 = vadd.f32 %v727, %v681
    %v735 = vadd.f32 %v728, %v683
    %v736 = vadd.f32 %v729, %v685
    %v737 = vadd.f32 %v730, %v687
    %v738 = vadd.f32 %v731, %v689
    %v739 = vmax.f32 %v718, %v732
    %v740 = vmax.f32 %v719, %v733
    %v741 = vmax.f32 %v720, %v734
    %v742 = vmax.f32 %v721, %v735
    %v743 = vmax.f32 %v722, %v736
    %v744 = vmax.f32 %v723, %v737
    %v745 = vmax.f32 %v724, %v738
    %v746 = vmul.f32 %v260, %v642
    %v747 = vmul.f32 %v263, %v645
    %v748 = vmul.f32 %v266, %v648
    %v749 = vmul.f32 %v269, %v651
    %v750 = vmul.f32 %v272, %v654
    %v751 = vmul.f32 %v275, %v657
    %v752 = vmul.f32 %v278, %v660
    %v753 = vadd.f32 %v746, %v677
    %v754 = vadd.f32 %v747, %v679
    %v755 = vadd.f32 %v748, %v681
    %v756 = vadd.f32 %v749, %v683
    %v757 = vadd.f32 %v750, %v685
    %v758 = vadd.f32 %v751, %v687
    %v759 = vadd.f32 %v752, %v689
    %v760 = vmax.f32 %v739, %v753
    %v761 = vmax.f32 %v740, %v754
    %v762 = vmax.f32 %v741, %v755
    %v763 = vmax.f32 %v742, %v756
    %v764 = vmax.f32 %v743, %v757
    %v765 = vmax.f32 %v744, %v758
    %v766 = vmax.f32 %v745, %v759
    %v767 = vmax.f32 %v760, 0.0
    %v768 = vmax.f32 %v761, 0.0
    %v769 = vmax.f32 %v762, 0.0
    %v770 = vmax.f32 %v763, 0.0
    %v771 = vmax.f32 %v764, 0.0
    %v772 = vmax.f32 %v765, 0.0
    %v773 = vmax.f32 %v766, 0.0
    %v774 = vld [vmem:[%s9] sm:$0xff]
    %v775 = vld [vmem:[%s9 + $0x8] sm:$0xff]
    %v776 = vld [vmem:[%s9 + $0x10] sm:$0xff]
    %v777 = vld [vmem:[%s9 + $0x18] sm:$0xff]
    %v778 = vld [vmem:[%s9 + $0x20] sm:$0xf]
    %v779 = vld [vmem:[%s9 + $0x28] sm:$0xf]
    %v781 = vsel %vm420, %v767, 0
    %v784 = vsel %vm420, %v768, 0
    %v787 = vsel %vm420, %v769, 0
    %v790 = vsel %vm420, %v770, 0
    %v793 = vsel %vm420, %v771, 0
    %v796 = vsel %vm420, %v772, 0
    %v799 = vsel %vm420, %v773, 0
    %v802 = vsel %vm175, %v778, 0
    %v805 = vsel %vm175, %v779, 0
    %807 = vmatpush.msra.mxu0 0.0
    %808 = vmatpush.msra.mxu0 0.0
    %809 = vmatpush.msra.mxu0 0.0
    %810 = vmatpush.msra.mxu0 0.0
    %811 = vmatpush.msra.mxu0 0.0
    %812 = vmatpush.msra.mxu0 0.0
    %813 = vmatpush.msra.mxu0 0.0
    %814 = vmatpush.msra.mxu0 0.0
    %815 = vmatpush.msra.mxu0 0.0
    %816 = vmatpush.msra.mxu0 0.0
    %817 = vmatpush.msra.mxu0 0.0
    %818 = vmatpush.msra.mxu0 0.0
    %819 = vmatpush.msra.mxu0 0.0
    %820 = vmatpush.msra.mxu0 %v802
    %821 = vmatpush.msra.mxu0 %v776
    %822 = vmatpush.msra.mxu0 %v774
    %823 = vmatmul.f32.gmra.mxu0 %v781
    %v824 = vpop.f32.mrf.mxu0
    %v825 = vadd.f32 0.0, %v824
    %826 = vmatmul.f32.gmra.mxu0 %v784
    %v827 = vpop.f32.mrf.mxu0
    %v828 = vadd.f32 0.0, %v827
    %829 = vmatmul.f32.gmra.mxu0 %v787
    %v830 = vpop.f32.mrf.mxu0
    %v831 = vadd.f32 0.0, %v830
    %832 = vmatmul.f32.gmra.mxu0 %v790
    %v833 = vpop.f32.mrf.mxu0
    %v834 = vadd.f32 0.0, %v833
    %835 = vmatmul.f32.gmra.mxu0 %v793
    %v836 = vpop.f32.mrf.mxu0
    %v837 = vadd.f32 0.0, %v836
    %838 = vmatmul.f32.gmra.mxu0 %v796
    %v839 = vpop.f32.mrf.mxu0
    %v840 = vadd.f32 0.0, %v839
    %841 = vmatmul.f32.gmra.mxu0 %v799
    %v842 = vpop.f32.mrf.mxu0
    %v843 = vadd.f32 0.0, %v842
    %844 = vdwg.mxu0
    %845 = vmatpush.msra.mxu0 0.0
    %846 = vmatpush.msra.mxu0 0.0
    %847 = vmatpush.msra.mxu0 0.0
    %848 = vmatpush.msra.mxu0 0.0
    %849 = vmatpush.msra.mxu0 0.0
    %850 = vmatpush.msra.mxu0 0.0
    %851 = vmatpush.msra.mxu0 0.0
    %852 = vmatpush.msra.mxu0 0.0
    %853 = vmatpush.msra.mxu0 0.0
    %854 = vmatpush.msra.mxu0 0.0
    %855 = vmatpush.msra.mxu0 0.0
    %856 = vmatpush.msra.mxu0 0.0
    %857 = vmatpush.msra.mxu0 0.0
    %858 = vmatpush.msra.mxu0 %v805
    %859 = vmatpush.msra.mxu0 %v777
    %860 = vmatpush.msra.mxu0 %v775
    %861 = vmatmul.f32.gmra.mxu0 %v781
    %v862 = vpop.f32.mrf.mxu0
    %v863 = vadd.f32 0.0, %v862
    %864 = vmatmul.f32.gmra.mxu0 %v784
    %v865 = vpop.f32.mrf.mxu0
    %v866 = vadd.f32 0.0, %v865
    %867 = vmatmul.f32.gmra.mxu0 %v787
    %v868 = vpop.f32.mrf.mxu0
    %v869 = vadd.f32 0.0, %v868
    %870 = vmatmul.f32.gmra.mxu0 %v790
    %v871 = vpop.f32.mrf.mxu0
    %v872 = vadd.f32 0.0, %v871
    %873 = vmatmul.f32.gmra.mxu0 %v793
    %v874 = vpop.f32.mrf.mxu0
    %v875 = vadd.f32 0.0, %v874
    %876 = vmatmul.f32.gmra.mxu0 %v796
    %v877 = vpop.f32.mrf.mxu0
    %v878 = vadd.f32 0.0, %v877
    %879 = vmatmul.f32.gmra.mxu0 %v799
    %v880 = vpop.f32.mrf.mxu0
    %v881 = vadd.f32 0.0, %v880
    %882 = vdwg.mxu0
    %v883 = vld [vmem:[%s10] sm:$0xff]
    %v884 = vld [vmem:[%s10 + $0x8] sm:$0xff]
    %v885 = vld [vmem:[%s10 + $0x10] sm:$0xff]
    %v886 = vld [vmem:[%s10 + $0x18] sm:$0xff]
    %v887 = vld [vmem:[%s10 + $0x20] sm:$0xff]
    %v888 = vld [vmem:[%s10 + $0x28] sm:$0xff]
    %v889 = vld [vmem:[%s10 + $0x30] sm:$0xff]
    %v890 = vld [vmem:[%s10 + $0x38] sm:$0xff]
    %v891 = vld [vmem:[%s10 + $0x40] sm:$0xff]
    %v892 = vld [vmem:[%s10 + $0x48] sm:$0xff]
    %v893 = vld [vmem:[%s10 + $0x50] sm:$0xff]
    %v894 = vld [vmem:[%s10 + $0x58] sm:$0xff]
    %v895 = vld [vmem:[%s10 + $0x60] sm:$0xff]
    %v896 = vld [vmem:[%s10 + $0x68] sm:$0xff]
    %v897 = vmul.f32 %v825, %v883
    %v898 = vmul.f32 %v863, %v884
    %v899 = vmul.f32 %v828, %v885
    %v900 = vmul.f32 %v866, %v886
    %v901 = vmul.f32 %v831, %v887
    %v902 = vmul.f32 %v869, %v888
    %v903 = vmul.f32 %v834, %v889
    %v904 = vmul.f32 %v872, %v890
    %v905 = vmul.f32 %v837, %v891
    %v906 = vmul.f32 %v875, %v892
    %v907 = vmul.f32 %v840, %v893
    %v908 = vmul.f32 %v878, %v894
    %v909 = vmul.f32 %v843, %v895
    %v910 = vmul.f32 %v881, %v896
    %v911 = vld [vmem:[%s11] sm:$0xff]
    %v912 = vld [vmem:[%s11 + $0x8] sm:$0xff]
    %v913 = vld [vmem:[%s11 + $0x10] sm:$0xff]
    %v914 = vld [vmem:[%s11 + $0x18] sm:$0xff]
    %v915 = vld [vmem:[%s11 + $0x20] sm:$0xff]
    %v916 = vld [vmem:[%s11 + $0x28] sm:$0xff]
    %v917 = vld [vmem:[%s11 + $0x30] sm:$0xff]
    %v918 = vld [vmem:[%s11 + $0x38] sm:$0xff]
    %v919 = vld [vmem:[%s11 + $0x40] sm:$0xff]
    %v920 = vld [vmem:[%s11 + $0x48] sm:$0xff]
    %v921 = vld [vmem:[%s11 + $0x50] sm:$0xff]
    %v922 = vld [vmem:[%s11 + $0x58] sm:$0xff]
    %v923 = vld [vmem:[%s11 + $0x60] sm:$0xff]
    %v924 = vld [vmem:[%s11 + $0x68] sm:$0xff]
    %v925 = vld [vmem:[%s11 + $0x70] sm:$0xff]
    %v926 = vld [vmem:[%s11 + $0x78] sm:$0xff]
    %v927 = vld [vmem:[%s11 + $0x80] sm:$0xff]
    %v928 = vld [vmem:[%s11 + $0x88] sm:$0xff]
    %v929 = vld [vmem:[%s11 + $0x90] sm:$0xff]
    %v930 = vld [vmem:[%s11 + $0x98] sm:$0xff]
    %v931 = vld [vmem:[%s11 + $0xa0] sm:$0xff]
    %v932 = vld [vmem:[%s11 + $0xa8] sm:$0xff]
    %v933 = vld [vmem:[%s11 + $0xb0] sm:$0xff]
    %v934 = vld [vmem:[%s11 + $0xb8] sm:$0xff]
    %v935 = vld [vmem:[%s11 + $0xc0] sm:$0xff]
    %vm936 = vcmask 588800
    %v938 = vsel %vm936, %v898, 0
    %v941 = vsel %vm936, %v900, 0
    %v944 = vsel %vm936, %v902, 0
    %v947 = vsel %vm936, %v904, 0
    %v950 = vsel %vm936, %v906, 0
    %v953 = vsel %vm936, %v908, 0
    %v956 = vsel %vm936, %v910, 0
    %958 = vmatpush.msra.mxu0 %v926
    %959 = vmatpush.msra.mxu0 %v925
    %960 = vmatpush.msra.mxu0 %v924
    %961 = vmatpush.msra.mxu0 %v923
    %962 = vmatpush.msra.mxu0 %v922
    %963 = vmatpush.msra.mxu0 %v921
    %964 = vmatpush.msra.mxu0 %v920
    %965 = vmatpush.msra.mxu0 %v919
    %966 = vmatpush.msra.mxu0 %v918
    %967 = vmatpush.msra.mxu0 %v917
    %968 = vmatpush.msra.mxu0 %v916
    %969 = vmatpush.msra.mxu0 %v915
    %970 = vmatpush.msra.mxu0 %v914
    %971 = vmatpush.msra.mxu0 %v913
    %972 = vmatpush.msra.mxu0 %v912
    %973 = vmatpush.msra.mxu0 %v911
    %974 = vmatmul.f32.gmra.mxu0 %v897
    %v975 = vpop.f32.mrf.mxu0
    %v976 = vadd.f32 0.0, %v975
    %977 = vmatmul.f32.gmra.mxu0 %v899
    %v978 = vpop.f32.mrf.mxu0
    %v979 = vadd.f32 0.0, %v978
    %980 = vmatmul.f32.gmra.mxu0 %v901
    %v981 = vpop.f32.mrf.mxu0
    %v982 = vadd.f32 0.0, %v981
    %983 = vmatmul.f32.gmra.mxu0 %v903
    %v984 = vpop.f32.mrf.mxu0
    %v985 = vadd.f32 0.0, %v984
    %986 = vmatmul.f32.gmra.mxu0 %v905
    %v987 = vpop.f32.mrf.mxu0
    %v988 = vadd.f32 0.0, %v987
    %989 = vmatmul.f32.gmra.mxu0 %v907
    %v990 = vpop.f32.mrf.mxu0
    %v991 = vadd.f32 0.0, %v990
    %992 = vmatmul.f32.gmra.mxu0 %v909
    %v993 = vpop.f32.mrf.mxu0
    %v994 = vadd.f32 0.0, %v993
    %995 = vdwg.mxu0
    %996 = vmatpush.msra.mxu0 0.0
    %997 = vmatpush.msra.mxu0 0.0
    %998 = vmatpush.msra.mxu0 0.0
    %999 = vmatpush.msra.mxu0 0.0
    %1000 = vmatpush.msra.mxu0 0.0
    %1001 = vmatpush.msra.mxu0 0.0
    %1002 = vmatpush.msra.mxu0 0.0
    %1003 = vmatpush.msra.mxu0 %v935
    %1004 = vmatpush.msra.mxu0 %v934
    %1005 = vmatpush.msra.mxu0 %v933
    %1006 = vmatpush.msra.mxu0 %v932
    %1007 = vmatpush.msra.mxu0 %v931
    %1008 = vmatpush.msra.mxu0 %v930
    %1009 = vmatpush.msra.mxu0 %v929
    %1010 = vmatpush.msra.mxu0 %v928
    %1011 = vmatpush.msra.mxu0 %v927
    %1012 = vmatmul.f32.gmra.mxu0 %v938
    %v1013 = vpop.f32.mrf.mxu0
    %v1014 = vadd.f32 %v976, %v1013
    %1015 = vmatmul.f32.gmra.mxu0 %v941
    %v1016 = vpop.f32.mrf.mxu0
    %v1017 = vadd.f32 %v979, %v1016
    %1018 = vmatmul.f32.gmra.mxu0 %v944
    %v1019 = vpop.f32.mrf.mxu0
    %v1020 = vadd.f32 %v982, %v1019
    %1021 = vmatmul.f32.gmra.mxu0 %v947
    %v1022 = vpop.f32.mrf.mxu0
    %v1023 = vadd.f32 %v985, %v1022
    %1024 = vmatmul.f32.gmra.mxu0 %v950
    %v1025 = vpop.f32.mrf.mxu0
    %v1026 = vadd.f32 %v988, %v1025
    %1027 = vmatmul.f32.gmra.mxu0 %v953
    %v1028 = vpop.f32.mrf.mxu0
    %v1029 = vadd.f32 %v991, %v1028
    %1030 = vmatmul.f32.gmra.mxu0 %v956
    %v1031 = vpop.f32.mrf.mxu0
    %v1032 = vadd.f32 %v994, %v1031
    %1033 = vdwg.mxu0
    %v1034 = vld [vmem:[%s12] sm:$0x1]
    %v1036 = vperm.slane %v1034, 0
    %1038 = vmatpush.msra.mxu0 0.0
    %1039 = vmatpush.msra.mxu0 0.0
    %1040 = vmatpush.msra.mxu0 0.0
    %1041 = vmatpush.msra.mxu0 0.0
    %1042 = vmatpush.msra.mxu0 0.0
    %1043 = vmatpush.msra.mxu0 0.0
    %1044 = vmatpush.msra.mxu0 0.0
    %1045 = vmatpush.msra.mxu0 0.0
    %1046 = vmatpush.msra.mxu0 0.0
    %1047 = vmatpush.msra.mxu0 %v1032
    %1048 = vmatpush.msra.mxu0 %v1029
    %1049 = vmatpush.msra.mxu0 %v1026
    %1050 = vmatpush.msra.mxu0 %v1023
    %1051 = vmatpush.msra.mxu0 %v1020
    %1052 = vmatpush.msra.mxu0 %v1017
    %1053 = vmatpush.msra.mxu0 %v1014
    %1054 = vmatmul.f32.gmra.mxu0 %v473
    %v1055 = vpop.f32.mrf.mxu0
    %v1056 = vadd.f32 %v1036, %v1055
    %1057 = vdwg.mxu0
    %vm1058 = vcmask 74752
    %1059 = vst.msk [vmem:[#allocation2] sm:$0x3] %vm1058, %v1056
    // Predicated region
    $region54: #{tpu_custom_call.1} parent=1 // pred_check
      _
    $region55: #{tpu_custom_call.1} parent=1 // pred_check_branch
      %1061 = sbr.rel (0) target = $region57
    $region56: #{tpu_custom_call.1} parent=1 // pred_region
      %1063 = vsyncadd [#allocation3], 0
      %s1065 = sshll.u32 [#allocation2], 4
      %s1066 = int_to_ptr.vmem [resolvable:$true] %s1065
      %s1067 = sshll.u32 %s13, 4
      %s1068 = int_to_ptr.hbm [resolvable:$true] %s1067
      %1070 = dma.vmem_to_hbm [thread:$0]  %s1066, 32, %s1068, [#allocation3]
    $region57: #{tpu_custom_call.1} parent=1 // pred_fallthru
      _
    // Predicated region
    $region58: #{tpu_custom_call.1} parent=1 // pred_check
      _
    $region59: #{tpu_custom_call.1} parent=1 // pred_check_branch
      %1072 = sbr.rel (0) target = $region61
    $region60: #{tpu_custom_call.1} parent=1 // pred_region
      %1074 = dma.done [#allocation3], 32
    $region61: #{tpu_custom_call.1} parent=1 // pred_fallthru
      _
    %1075 = vsyncpa [#allocation3], 1

</llo_original>
